<compile_context>
chip_gen: v7x
topology: tpu7x:2x2x1
jax: 0.10.0
libtpu: 0.0.40
codegen_flags: <defaults>
</compile_context>

<pallas_src>
import jax
import jax.numpy as jnp
from jax.experimental import pallas as pl
from jax.experimental.pallas import tpu as pltpu

_NEG_SLOPE = 0.01  # torch.nn.functional.leaky_relu default negative_slope


def _round_up(n: int, m: int) -> int:
    return (n + m - 1) // m * m


def _mlp_kernel(x_ref, w1_ref, b1_ref, w2_ref, b2_ref, o_ref):
    x = x_ref[...]                       # [TB, Cin] (Cin un-padded, tiny)
    tb, cin = x.shape
    hp = w1_ref.shape[1]                 # H padded to a multiple of 128
    cout = o_ref.shape[1]                # narrow (un-padded) output width

    # ---- Layer 1: x @ W1 + b1 -------------------------------------------
    if cin <= 16:
        # Cin is tiny: `cin` broadcast FMAs on the VPU beat an MXU matmul
        # that would be ~97% padding.  Load w1 once (2 KB -> a couple vregs).
        w1 = w1_ref[...]
        h = jnp.broadcast_to(b1_ref[...], (tb, hp)).astype(jnp.float32)
        for c in range(cin):             # static unroll at trace time
            h = h + x[:, c:c + 1] * w1[c:c + 1, :]
    else:
        h = jnp.dot(x, w1_ref[...], preferred_element_type=jnp.float32)
        h = h + b1_ref[...]

    # ---- LeakyReLU (negative_slope = 0.01): mul + max on the VPU ----------
    h = jnp.maximum(h, _NEG_SLOPE * h)

    # ---- Layer 2: [TB,Hp] @ [Hp,Cp] on the MXU, store live columns only ---
    y = jnp.dot(h, w2_ref[...], preferred_element_type=jnp.float32)
    y = y + b2_ref[...]
    o_ref[...] = y[:, :cout].astype(o_ref.dtype)


def _pick_batch_tiling(batch: int):
    """Row-tile count / size: minimal padding, >=2 tiles for v7x when big."""
    n_tiles = max(1, pl.cdiv(batch, 512))
    if batch > 64:
        # v7x has 2 TensorCores; keep the "parallel" batch axis >= 2 tiles so
        # both cores get work.  Costs only one extra ~0.35us grid step on the
        # single-core v5e/v6e chips.
        n_tiles = max(n_tiles, 2)
    tb = _round_up(pl.cdiv(batch, n_tiles), 8)
    return n_tiles, tb


def _mlp_pallas(x, w1p, b1p, w2p, b2p, out_features):
    """x: [B, Cin]; w1p: [Cin, Hp]; b1p: [1, Hp]; w2p: [Hp, Cp]; b2p: [1, Cp]."""
    B, Cin = x.shape
    Hp = w1p.shape[1]
    Cp = w2p.shape[1]
    Cout = out_features

    n_tiles, TB = _pick_batch_tiling(B)
    Bp = n_tiles * TB

    xp = x.astype(jnp.float32)
    if Bp != B:
        xp = jnp.zeros((Bp, Cin), jnp.float32).at[:B, :].set(xp)

    flops = 2 * Bp * (Cin * Hp + Hp * Cp)
    bytes_accessed = 4 * (Bp * Cin + Cin * Hp + Hp + Hp * Cp + Cp + Bp * Cout)

    out = pl.pallas_call(
        _mlp_kernel,
        out_shape=jax.ShapeDtypeStruct((Bp, Cout), jnp.float32),
        grid=(n_tiles,),
        in_specs=[
            pl.BlockSpec((TB, Cin), lambda i: (i, 0)),    # x tile per step
            pl.BlockSpec((Cin, Hp), lambda i: (0, 0)),    # VMEM-resident params
            pl.BlockSpec((1, Hp), lambda i: (0, 0)),
            pl.BlockSpec((Hp, Cp), lambda i: (0, 0)),
            pl.BlockSpec((1, Cp), lambda i: (0, 0)),
        ],
        # Narrow output block: last dim = Cout (full-array-dim exception).
        out_specs=pl.BlockSpec((TB, Cout), lambda i: (i, 0)),
        compiler_params=pltpu.CompilerParams(
            dimension_semantics=("parallel",)),
        cost_estimate=pl.CostEstimate(
            flops=flops, transcendentals=0, bytes_accessed=bytes_accessed),
    )(xp, w1p, b1p, w2p, b2p)

    if Bp != B:
        out = out[:B, :]
    return out


def make_forward_fn(w1, b1, w2, b2):
    """Pad params ONCE (hoisted out of the hot path) and return jitted forward.

    w1: [Cin, H]; b1: [H]; w2: [H, Cout]; b2: [Cout]  (stored as
    [in_features, out_features], i.e. transposed vs. torch's [out, in]).
    """
    Cin, H = w1.shape
    Cout = w2.shape[1]
    Hp = _round_up(H, 128)
    Cp = _round_up(Cout, 128)

    w1p = jnp.zeros((Cin, Hp), jnp.float32).at[:, :H].set(w1.astype(jnp.float32))
    b1p = jnp.zeros((1, Hp), jnp.float32).at[:, :H].set(
        b1.reshape(1, H).astype(jnp.float32))
    w2p = jnp.zeros((Hp, Cp), jnp.float32).at[:H, :Cout].set(w2.astype(jnp.float32))
    b2p = jnp.zeros((1, Cp), jnp.float32).at[:, :Cout].set(
        b2.reshape(1, Cout).astype(jnp.float32))

    def forward(x):
        return _mlp_pallas(x, w1p, b1p, w2p, b2p, Cout)

    return jax.jit(forward)


def init_params(key, in_channels, n_hidden, out_channels):
    """Deterministic init mirroring nn.Linear's U(-1/sqrt(fan_in), 1/sqrt(fan_in))."""
    # TODO(synk): torch.manual_seed(0) Kaiming-uniform values are not bit-reproducible
    # in JAX; distribution-equivalent init is used instead.
    k1, k2, k3, k4 = jax.random.split(key, 4)
    bound1 = 1.0 / jnp.sqrt(in_channels)
    bound2 = 1.0 / jnp.sqrt(n_hidden)
    w1 = jax.random.uniform(k1, (in_channels, n_hidden), jnp.float32, -bound1, bound1)
    b1 = jax.random.uniform(k2, (n_hidden,), jnp.float32, -bound1, bound1)
    w2 = jax.random.uniform(k3, (n_hidden, out_channels), jnp.float32, -bound2, bound2)
    b2 = jax.random.uniform(k4, (out_channels,), jnp.float32, -bound2, bound2)
    return w1, b1, w2, b2


def _reference(x, w1, b1, w2, b2):
    h = x @ w1 + b1
    h = jnp.where(h >= 0, h, _NEG_SLOPE * h)
    return h @ w2 + b2


if __name__ == "__main__":
    in_channels, n_hidden, out_channels = 4, 32, 3

    key = jax.random.PRNGKey(0)
    kx_small, kx_big, kp = jax.random.split(key, 3)
    w1, b1, w2, b2 = init_params(kp, in_channels, n_hidden, out_channels)

    # Padding hoisted: done once here, not per forward call.
    forward = make_forward_fn(w1, b1, w2, b2)

    # Case 1: small batch (single grid step), matches typical module usage.
    x_small = jax.random.normal(kx_small, (8, in_channels), jnp.float32)
    out_small = jax.block_until_ready(forward(x_small))
    ref_small = _reference(x_small, w1, b1, w2, b2)
    assert out_small.shape == (8, out_channels)
    assert jnp.allclose(out_small, ref_small, atol=1e-5, rtol=1e-5)

    # Case 2: B=300 -> 2 tiles of 152 rows (only 4 padded rows; one tile per
    # TensorCore on v7x).
    x_big = jax.random.normal(kx_big, (300, in_channels), jnp.float32)
    out_big = jax.block_until_ready(forward(x_big))
    ref_big = _reference(x_big, w1, b1, w2, b2)
    assert out_big.shape == (300, out_channels)
    assert jnp.allclose(out_big, ref_big, atol=1e-5, rtol=1e-5)

    print("KERNEL_OK")
</pallas_src>

<mosaic_0001>
module attributes {stable_mosaic.version = 11 : i64} {
  func.func @_mlp_kernel(%arg0: i32, %arg1: memref<8x4xf32, #tpu.memory_space<vmem>>, %arg2: memref<4x128xf32, #tpu.memory_space<vmem>>, %arg3: memref<1x128xf32, #tpu.memory_space<vmem>>, %arg4: memref<128x128xf32, #tpu.memory_space<vmem>>, %arg5: memref<1x128xf32, #tpu.memory_space<vmem>>, %arg6: memref<8x3xf32, #tpu.memory_space<vmem>>) attributes {dimension_semantics = [#tpu.dimension_semantics<parallel>], iteration_bounds = array<i64: 1>, scalar_prefetch = 0 : i64, scratch_operands = 0 : i64, tpu.core_type = #tpu.core_type<tc>, window_params = [{transform_indices = @transform_0, window_bounds = array<i64: 8, 4>}, {pipeline_mode = #tpu.pipeline_mode<synchronous>, transform_indices = @transform_1, window_bounds = array<i64: 4, 128>}, {pipeline_mode = #tpu.pipeline_mode<synchronous>, transform_indices = @transform_2, window_bounds = array<i64: 1, 128>}, {pipeline_mode = #tpu.pipeline_mode<synchronous>, transform_indices = @transform_3, window_bounds = array<i64: 128, 128>}, {pipeline_mode = #tpu.pipeline_mode<synchronous>, transform_indices = @transform_4, window_bounds = array<i64: 1, 128>}, {transform_indices = @transform_5, window_bounds = array<i64: 8, 3>}]} {
    %c0 = arith.constant 0 : index
    %c0_0 = arith.constant 0 : index
    %0 = vector.load %arg1[%c0, %c0_0] : memref<8x4xf32, #tpu.memory_space<vmem>>, vector<8x4xf32>
    %c0_1 = arith.constant 0 : index
    %c0_2 = arith.constant 0 : index
    %1 = vector.load %arg2[%c0_1, %c0_2] : memref<4x128xf32, #tpu.memory_space<vmem>>, vector<4x128xf32>
    %c0_3 = arith.constant 0 : index
    %c0_4 = arith.constant 0 : index
    %2 = vector.load %arg3[%c0_3, %c0_4] : memref<1x128xf32, #tpu.memory_space<vmem>>, vector<1x128xf32>
    %3 = vector.shape_cast %2 : vector<1x128xf32> to vector<1x128xf32>
    %4 = vector.broadcast %3 : vector<1x128xf32> to vector<8x128xf32>
    %5 = vector.extract_strided_slice %0 {offsets = [0, 0], sizes = [8, 1], strides = [1, 1]} : vector<8x4xf32> to vector<8x1xf32>
    %6 = vector.extract_strided_slice %1 {offsets = [0, 0], sizes = [1, 128], strides = [1, 1]} : vector<4x128xf32> to vector<1x128xf32>
    %7 = vector.broadcast %5 : vector<8x1xf32> to vector<8x128xf32>
    %8 = vector.broadcast %6 : vector<1x128xf32> to vector<8x128xf32>
    %9 = arith.mulf %7, %8 : vector<8x128xf32>
    %10 = arith.addf %4, %9 : vector<8x128xf32>
    %11 = vector.extract_strided_slice %0 {offsets = [0, 1], sizes = [8, 1], strides = [1, 1]} : vector<8x4xf32> to vector<8x1xf32>
    %12 = vector.extract_strided_slice %1 {offsets = [1, 0], sizes = [1, 128], strides = [1, 1]} : vector<4x128xf32> to vector<1x128xf32>
    %13 = vector.broadcast %11 : vector<8x1xf32> to vector<8x128xf32>
    %14 = vector.broadcast %12 : vector<1x128xf32> to vector<8x128xf32>
    %15 = arith.mulf %13, %14 : vector<8x128xf32>
    %16 = arith.addf %10, %15 : vector<8x128xf32>
    %17 = vector.extract_strided_slice %0 {offsets = [0, 2], sizes = [8, 1], strides = [1, 1]} : vector<8x4xf32> to vector<8x1xf32>
    %18 = vector.extract_strided_slice %1 {offsets = [2, 0], sizes = [1, 128], strides = [1, 1]} : vector<4x128xf32> to vector<1x128xf32>
    %19 = vector.broadcast %17 : vector<8x1xf32> to vector<8x128xf32>
    %20 = vector.broadcast %18 : vector<1x128xf32> to vector<8x128xf32>
    %21 = arith.mulf %19, %20 : vector<8x128xf32>
    %22 = arith.addf %16, %21 : vector<8x128xf32>
    %23 = vector.extract_strided_slice %0 {offsets = [0, 3], sizes = [8, 1], strides = [1, 1]} : vector<8x4xf32> to vector<8x1xf32>
    %24 = vector.extract_strided_slice %1 {offsets = [3, 0], sizes = [1, 128], strides = [1, 1]} : vector<4x128xf32> to vector<1x128xf32>
    %25 = vector.broadcast %23 : vector<8x1xf32> to vector<8x128xf32>
    %26 = vector.broadcast %24 : vector<1x128xf32> to vector<8x128xf32>
    %27 = arith.mulf %25, %26 : vector<8x128xf32>
    %28 = arith.addf %22, %27 : vector<8x128xf32>
    %cst = arith.constant 0.00999999977 : f32
    %29 = vector.broadcast %cst : f32 to vector<8x128xf32>
    %30 = arith.mulf %29, %28 : vector<8x128xf32>
    %31 = arith.maximumf %28, %30 : vector<8x128xf32>
    %c0_5 = arith.constant 0 : index
    %c0_6 = arith.constant 0 : index
    %32 = vector.load %arg4[%c0_5, %c0_6] : memref<128x128xf32, #tpu.memory_space<vmem>>, vector<128x128xf32>
    %cst_7 = arith.constant dense<0.000000e+00> : vector<8x128xf32>
    %33 = tpu.matmul %31, %32, %cst_7 {dimension_numbers = #tpu.dot_dimension_numbers<[1], [0], [0], [1], [0, 0, 1, 1], [], []>} : vector<8x128xf32>, vector<128x128xf32>, vector<8x128xf32> -> vector<8x128xf32>
    %c0_8 = arith.constant 0 : index
    %c0_9 = arith.constant 0 : index
    %34 = vector.load %arg5[%c0_8, %c0_9] : memref<1x128xf32, #tpu.memory_space<vmem>>, vector<1x128xf32>
    %35 = vector.broadcast %34 : vector<1x128xf32> to vector<8x128xf32>
    %36 = arith.addf %33, %35 : vector<8x128xf32>
    %37 = vector.extract_strided_slice %36 {offsets = [0, 0], sizes = [8, 3], strides = [1, 1]} : vector<8x128xf32> to vector<8x3xf32>
    %c0_10 = arith.constant 0 : index
    %c0_11 = arith.constant 0 : index
    %38 = vector.load %arg6[%c0_10, %c0_11] : memref<8x3xf32, #tpu.memory_space<vmem>>, vector<8x3xf32>
    tpu.vector_store %arg6[%c0_10, %c0_11], %37 {strides = array<i32>} : memref<8x3xf32, #tpu.memory_space<vmem>>, vector<8x3xf32>,
    return
  }
  func.func @transform_0(%arg0: i32) -> (i32, i32) {
    %c0_i32 = arith.constant 0 : i32
    %c0_i32_0 = arith.constant 0 : i32
    return %arg0, %c0_i32 : i32, i32
  }
  func.func @transform_1(%arg0: i32) -> (i32, i32) {
    %c0_i32 = arith.constant 0 : i32
    %c0_i32_0 = arith.constant 0 : i32
    %c0_i32_1 = arith.constant 0 : i32
    return %c0_i32, %c0_i32_0 : i32, i32
  }
  func.func @transform_2(%arg0: i32) -> (i32, i32) {
    %c0_i32 = arith.constant 0 : i32
    %c0_i32_0 = arith.constant 0 : i32
    %c0_i32_1 = arith.constant 0 : i32
    return %c0_i32, %c0_i32_0 : i32, i32
  }
  func.func @transform_3(%arg0: i32) -> (i32, i32) {
    %c0_i32 = arith.constant 0 : i32
    %c0_i32_0 = arith.constant 0 : i32
    %c0_i32_1 = arith.constant 0 : i32
    return %c0_i32, %c0_i32_0 : i32, i32
  }
  func.func @transform_4(%arg0: i32) -> (i32, i32) {
    %c0_i32 = arith.constant 0 : i32
    %c0_i32_0 = arith.constant 0 : i32
    %c0_i32_1 = arith.constant 0 : i32
    return %c0_i32, %c0_i32_0 : i32, i32
  }
  func.func @transform_5(%arg0: i32) -> (i32, i32) {
    %c0_i32 = arith.constant 0 : i32
    %c0_i32_0 = arith.constant 0 : i32
    return %arg0, %c0_i32 : i32, i32
  }
}

</mosaic_0001>

<llo_original>
// kernel: forward.1
$region0: #{forward.1}
  #allocation0 [shape = 'u32[]', space=smem, size = 0x4, offset = 0x4, fixed_abs, tag = 'smem constant byte address 0x4 - core index']
  #allocation1 [shape = 'u32[144,128]{1,0:T(1,128)}', space=vmem, size = 0x12000, scoped, tag = 'internal scratch']
  %s0 = inlined_call_operand.vmem [shape: f32[8,4], index: 0, kind: input, shape index: {}]
  %s1 = inlined_call_operand.vmem [shape: f32[4,128], index: 1, kind: input, shape index: {}]
  %s2 = inlined_call_operand.vmem [shape: f32[1,128], index: 2, kind: input, shape index: {}]
  %s3 = inlined_call_operand.hbm [shape: f32[128,128], index: 3, kind: input, shape index: {}]
  %s4 = inlined_call_operand.vmem [shape: f32[1,128], index: 4, kind: input, shape index: {}]
  %s5 = inlined_call_operand.vmem [shape: f32[8,3], index: 5, kind: output, shape index: {}]
  %s6 = sld [smem:[#allocation0]]
  $region34: #{forward.1} parent=0
    _
  %s8 = ssub.s32 1, %s6
  %s9 = scalar_select 0, %s8, %s6
  $region1: #{forward.1} parent=0
    #allocation2 [shape = 'u8[65536]{0}', space=vmem, size = 0x10000, scoped, tag = 'input window, operand 3, single buffered']
    #allocation3 [shape = 's32[1]{0}', space=sflag, size = 0x4, scoped, tag = 'scoped memory for forward.1']
    %10 = vsyncpa [#allocation3], 0
    // Predicated region
    $region2: #{forward.1} parent=1 // pred_check
      _
    $region3: #{forward.1} parent=1 // pred_check_branch
      %12 = sbr.rel (0) target = $region5
    $region4: #{forward.1} parent=1 // pred_region
      _
    $region5: #{forward.1} parent=1 // pred_fallthru
      _
    // Predicated region
    $region6: #{forward.1} parent=1 // pred_check
      _
    $region7: #{forward.1} parent=1 // pred_check_branch
      %14 = sbr.rel (0) target = $region9
    $region8: #{forward.1} parent=1 // pred_region
      _
    $region9: #{forward.1} parent=1 // pred_fallthru
      _
    // Predicated region
    $region10: #{forward.1} parent=1 // pred_check
      _
    $region11: #{forward.1} parent=1 // pred_check_branch
      %16 = sbr.rel (0) target = $region13
    $region12: #{forward.1} parent=1 // pred_region
      _
    $region13: #{forward.1} parent=1 // pred_fallthru
      _
    // Predicated region
    $region14: #{forward.1} parent=1 // pred_check
      _
    $region15: #{forward.1} parent=1 // pred_check_branch
      %18 = sbr.rel (0) target = $region17
    $region16: #{forward.1} parent=1 // pred_region
      %s20 = ssub.s32 2048, 2048
      %21 = vsyncadd [#allocation3], %s20
      %s22 = sshll.u32 [#allocation2], 4
      %s23 = int_to_ptr.vmem [resolvable:$true] %s22
      %28 = dma.hbm_to_vmem [thread:$0]  %s3, 2048, %s23, [#allocation3], 128, 128, 8
    $region17: #{forward.1} parent=1 // pred_fallthru
      _
    // Predicated region
    $region18: #{forward.1} parent=1 // pred_check
      _
    $region19: #{forward.1} parent=1 // pred_check_branch
      %30 = sbr.rel (0) target = $region21
    $region20: #{forward.1} parent=1 // pred_region
      _
    $region21: #{forward.1} parent=1 // pred_fallthru
      _
    // Predicated region
    $region22: #{forward.1} parent=1 // pred_check
      _
    $region23: #{forward.1} parent=1 // pred_check_branch
      %32 = sbr.rel (0) target = $region25
    $region24: #{forward.1} parent=1 // pred_region
      %33 = dma.done [#allocation3], 2048
    $region25: #{forward.1} parent=1 // pred_fallthru
      _
    %v34 = vld [vmem:[%s0] sm:$0xff]
    %v35 = vld [vmem:[%s1] sm:$0xf]
    %v36 = vld [vmem:[%s2] sm:$0x1]
    %v38 = vlaneseq
    %v39 = vshrl.u32 %v38, 7
    %v40 = vsub.s32 0, %v39
    %v41 = vrot.slane %v36, %v40
    %44 = vset.pattern.permute.xlu0 0
    %45 = vperm.xlu0 %44, %v34
    %v46 = vpop.permute.xlu0 %45
    %v48 = vlaneseq
    %v49 = vshrl.u32 %v48, 7
    %v50 = vsub.s32 0, %v49
    %v51 = vrot.slane %v35, %v50
    %v52 = vmul.f32 %v46, %v51
    %v53 = vadd.f32 %v41, %v52
    %54 = vset.pattern.permute.xlu0 1
    %55 = vperm.xlu0 %54, %v34
    %v56 = vpop.permute.xlu0 %55
    %v58 = vlaneseq
    %v59 = vshrl.u32 %v58, 7
    %v60 = vsub.s32 1, %v59
    %v61 = vrot.slane %v35, %v60
    %v62 = vmul.f32 %v56, %v61
    %v63 = vadd.f32 %v53, %v62
    %64 = vset.pattern.permute.xlu0 2
    %65 = vperm.xlu0 %64, %v34
    %v66 = vpop.permute.xlu0 %65
    %v68 = vlaneseq
    %v69 = vshrl.u32 %v68, 7
    %v70 = vsub.s32 2, %v69
    %v71 = vrot.slane %v35, %v70
    %v72 = vmul.f32 %v66, %v71
    %v73 = vadd.f32 %v63, %v72
    %74 = vset.pattern.permute.xlu0 3
    %75 = vperm.xlu0 %74, %v34
    %v76 = vpop.permute.xlu0 %75
    %v78 = vlaneseq
    %v79 = vshrl.u32 %v78, 7
    %v80 = vsub.s32 3, %v79
    %v81 = vrot.slane %v35, %v80
    %v82 = vmul.f32 %v76, %v81
    %v83 = vadd.f32 %v73, %v82
    %v84 = vmul.f32 %v83, 0.01
    %v85 = vmax.f32 %v83, %v84
    %v86 = vld [vmem:[#allocation2] sm:$0xff]
    %v87 = vld [vmem:[#allocation2 + $0x8] sm:$0xff]
    %v88 = vld [vmem:[#allocation2 + $0x10] sm:$0xff]
    %v89 = vld [vmem:[#allocation2 + $0x18] sm:$0xff]
    %v90 = vld [vmem:[#allocation2 + $0x20] sm:$0xff]
    %v91 = vld [vmem:[#allocation2 + $0x28] sm:$0xff]
    %v92 = vld [vmem:[#allocation2 + $0x30] sm:$0xff]
    %v93 = vld [vmem:[#allocation2 + $0x38] sm:$0xff]
    %v94 = vld [vmem:[#allocation2 + $0x40] sm:$0xff]
    %v95 = vld [vmem:[#allocation2 + $0x48] sm:$0xff]
    %v96 = vld [vmem:[#allocation2 + $0x50] sm:$0xff]
    %v97 = vld [vmem:[#allocation2 + $0x58] sm:$0xff]
    %v98 = vld [vmem:[#allocation2 + $0x60] sm:$0xff]
    %v99 = vld [vmem:[#allocation2 + $0x68] sm:$0xff]
    %v100 = vld [vmem:[#allocation2 + $0x70] sm:$0xff]
    %v101 = vld [vmem:[#allocation2 + $0x78] sm:$0xff]
    %v102 = vld [vmem:[%s4] sm:$0x1]
    %v104 = vlaneseq
    %v105 = vshrl.u32 %v104, 7
    %v106 = vsub.s32 0, %v105
    %v107 = vrot.slane %v102, %v106
    %109 = vmatprep.subr.mxu0 0.0
    %110 = vmatpush1.msra.mxu0 %v86
    %111 = vmatprep.subr.mxu0 0.0
    %112 = vmatpush1.msra.mxu0 %v87
    %113 = vmatprep.subr.mxu0 0.0
    %114 = vmatpush1.msra.mxu0 %v88
    %115 = vmatprep.subr.mxu0 0.0
    %116 = vmatpush1.msra.mxu0 %v89
    %117 = vmatprep.subr.mxu0 0.0
    %118 = vmatpush1.msra.mxu0 %v90
    %119 = vmatprep.subr.mxu0 0.0
    %120 = vmatpush1.msra.mxu0 %v91
    %121 = vmatprep.subr.mxu0 0.0
    %122 = vmatpush1.msra.mxu0 %v92
    %123 = vmatprep.subr.mxu0 0.0
    %124 = vmatpush1.msra.mxu0 %v93
    %125 = vmatprep.subr.mxu0 0.0
    %126 = vmatpush1.msra.mxu0 %v94
    %127 = vmatprep.subr.mxu0 0.0
    %128 = vmatpush1.msra.mxu0 %v95
    %129 = vmatprep.subr.mxu0 0.0
    %130 = vmatpush1.msra.mxu0 %v96
    %131 = vmatprep.subr.mxu0 0.0
    %132 = vmatpush1.msra.mxu0 %v97
    %133 = vmatprep.subr.mxu0 0.0
    %134 = vmatpush1.msra.mxu0 %v98
    %135 = vmatprep.subr.mxu0 0.0
    %136 = vmatpush1.msra.mxu0 %v99
    %137 = vmatprep.subr.mxu0 0.0
    %138 = vmatpush1.msra.mxu0 %v100
    %139 = vmatprep.subr.mxu0 0.0
    %140 = vmatpush1.msra.mxu0 %v101
    %141 = vmatprep.subr.mxu0 0.0
    %142 = vmatpush1.msra.mxu0 0.0
    %143 = vmatprep.subr.mxu0 0.0
    %144 = vmatpush1.msra.mxu0 0.0
    %145 = vmatprep.subr.mxu0 0.0
    %146 = vmatpush1.msra.mxu0 0.0
    %147 = vmatprep.subr.mxu0 0.0
    %148 = vmatpush1.msra.mxu0 0.0
    %149 = vmatprep.subr.mxu0 0.0
    %150 = vmatpush1.msra.mxu0 0.0
    %151 = vmatprep.subr.mxu0 0.0
    %152 = vmatpush1.msra.mxu0 0.0
    %153 = vmatprep.subr.mxu0 0.0
    %154 = vmatpush1.msra.mxu0 0.0
    %155 = vmatprep.subr.mxu0 0.0
    %156 = vmatpush1.msra.mxu0 0.0
    %157 = vmatprep.subr.mxu0 0.0
    %158 = vmatpush1.msra.mxu0 0.0
    %159 = vmatprep.subr.mxu0 0.0
    %160 = vmatpush1.msra.mxu0 0.0
    %161 = vmatprep.subr.mxu0 0.0
    %162 = vmatpush1.msra.mxu0 0.0
    %163 = vmatprep.subr.mxu0 0.0
    %164 = vmatpush1.msra.mxu0 0.0
    %165 = vmatprep.subr.mxu0 0.0
    %166 = vmatpush1.msra.mxu0 0.0
    %167 = vmatprep.subr.mxu0 0.0
    %168 = vmatpush1.msra.mxu0 0.0
    %169 = vmatprep.subr.mxu0 0.0
    %170 = vmatpush1.msra.mxu0 0.0
    %171 = vmatprep.subr.mxu0 0.0
    %172 = vmatpush1.msra.mxu0 0.0
    %173 = vmatprep.mubr.f32.mxu0 0.0
    %174 = vmatmul.mubr.f32.gmra.mrb[0].mxu0 %v85
    %v175 = vpop.f32.mrb[0].mxu0
    %v176 = vadd.f32 %v107, %v175
    %v177 = vpop.f32.mrb[0].mxu0
    %178 = vdwg.mxu0
    %vm179 = vcmask 23552
    %180 = vst.msk [vmem:[%s5] sm:$0xff] %vm179, %v176
    // Predicated region
    $region26: #{forward.1} parent=1 // pred_check
      _
    $region27: #{forward.1} parent=1 // pred_check_branch
      %182 = sbr.rel (0) target = $region29
    $region28: #{forward.1} parent=1 // pred_region
      _
    $region29: #{forward.1} parent=1 // pred_fallthru
      _
    // Predicated region
    $region30: #{forward.1} parent=1 // pred_check
      _
    $region31: #{forward.1} parent=1 // pred_check_branch
      %184 = sbr.rel (0) target = $region33
    $region32: #{forward.1} parent=1 // pred_region
      _
    $region33: #{forward.1} parent=1 // pred_fallthru
      _
    %185 = vsyncpa [#allocation3], 1

</llo_original>
